<compile_context>
chip_gen: v7x
topology: tpu7x:2x2x1
jax: 0.10.0
libtpu: 0.0.40
codegen_flags: <defaults>
</compile_context>

<pallas_src>
import math
from typing import NamedTuple

import jax
import jax.numpy as jnp
from jax import lax
from jax.experimental import pallas as pl
from jax.experimental.pallas import tpu as pltpu


def _round_up(n, m):
    return ((n + m - 1) // m) * m


def _device_vmem_bytes():
    """Physical VMEM of the attached TPU; conservative 64 MiB fallback (v7x)."""
    try:
        return int(pltpu.get_tpu_info().vmem_capacity_bytes)
    except Exception:
        return 64 * 1024 * 1024


class PreparedParams(NamedTuple):
    w1: jax.Array   # (in_dim, h1_pad) bf16, zero-padded hidden columns
    w2: jax.Array   # (h1_pad, h2_pad) bf16, zero-padded rows / cols
    b2: jax.Array   # (1, h2_pad) f32, zero-padded
    in_dim: int
    h1_pad: int
    h2: int         # original n_hidden_2 (output is sliced back to this)
    h2_pad: int


def prepare_params(params):
    """One-time preprocessing (hoisted out of the hot path).

    params = (w1, w2, b2) stored as (in, out): w1 (in_dim, h1), w2 (h1, h2),
    b2 (h2,) or (1, h2).  Zero padding is exact: relu(0) = 0 contributes
    nothing through the second matmul and zero output columns do not change
    the row L2 norm.
    """
    w1, w2, b2 = params
    in_dim, h1 = w1.shape
    h2 = w2.shape[1]
    b2 = jnp.reshape(b2, (1, h2))

    h1_pad = _round_up(max(h1, 128), 128)
    h2_pad = _round_up(max(h2, 128), 128)
    if h1_pad != h1:
        w1 = jnp.pad(w1, ((0, 0), (0, h1_pad - h1)))
        w2 = jnp.pad(w2, ((0, h1_pad - h1), (0, 0)))
    if h2_pad != h2:
        w2 = jnp.pad(w2, ((0, 0), (0, h2_pad - h2)))
        b2 = jnp.pad(b2, ((0, 0), (0, h2_pad - h2)))

    return PreparedParams(
        w1=w1.astype(jnp.bfloat16),
        w2=w2.astype(jnp.bfloat16),
        b2=b2.astype(jnp.float32),
        in_dim=in_dim, h1_pad=h1_pad, h2=h2, h2_pad=h2_pad)


# ----------------------------- kernels --------------------------------------

def _resident_kernel(scale):
    """1-D batch grid, weights fully VMEM-resident."""
    def kernel(x_ref, w1_ref, w2_ref, b2_ref, o_ref):
        x = x_ref[...].astype(jnp.bfloat16)                  # in-kernel cast
        h = jnp.dot(x, w1_ref[...], preferred_element_type=jnp.float32)
        h = jnp.maximum(h, 0.0)
        y = jnp.dot(h.astype(w2_ref.dtype), w2_ref[...],
                    preferred_element_type=jnp.float32) + b2_ref[...]
        ss = jnp.sum(y * y, axis=-1, keepdims=True)
        inv = lax.rsqrt(jnp.maximum(ss, 1e-24))              # 1/max(||y||,1e-12)
        o_ref[...] = (y * (inv * scale)).astype(o_ref.dtype)
    return kernel


def _split_kernel(scale):
    """2-D grid (batch tiles x h1 chunks) with f32 accumulator scratch."""
    def kernel(x_ref, w1_ref, w2_ref, b2_ref, o_ref, acc_ref):
        k = pl.program_id(1)

        @pl.when(k == 0)
        def _():
            acc_ref[...] = jnp.zeros_like(acc_ref)

        x = x_ref[...].astype(jnp.bfloat16)
        h = jnp.dot(x, w1_ref[...], preferred_element_type=jnp.float32)
        h = jnp.maximum(h, 0.0)                              # elementwise -> exact
        acc_ref[...] += jnp.dot(h.astype(w2_ref.dtype), w2_ref[...],
                                preferred_element_type=jnp.float32)

        @pl.when(k == pl.num_programs(1) - 1)
        def _():
            y = acc_ref[...] + b2_ref[...]
            ss = jnp.sum(y * y, axis=-1, keepdims=True)
            inv = lax.rsqrt(jnp.maximum(ss, 1e-24))
            o_ref[...] = (y * (inv * scale)).astype(o_ref.dtype)
    return kernel


# ----------------------------- wrapper ---------------------------------------

_SINGLE_BUFFER_WEIGHTS_OK = None   # probed once: does pl.Buffered(1) lower?


def _pick_h1_chunk(h1_pad, target=512):
    best, c = 128, 128
    while c <= min(h1_pad, target):
        if h1_pad % c == 0:
            best = c
        c += 128
    return best


def diff_dnn_forward(x, params, *, tb=512, out_dtype=jnp.float32,
                     force_h1_split=False, h1_chunk=None, x_buffers=None):
    """x: [batch, in_dim] float32; params: raw (w1, w2, b2) or PreparedParams.

    Returns [batch, n_hidden_2] in out_dtype (default float32).
    `x_buffers` optionally deepens x-tile pipelining (e.g. 3) if profiling
    shows exposed DMA on small in_dim.
    """
    prep = params if isinstance(params, PreparedParams) else prepare_params(params)
    batch, in_dim = x.shape
    assert in_dim == prep.in_dim, "x feature dim does not match params"
    h1_pad, h2, h2_pad = prep.h1_pad, prep.h2, prep.h2_pad
    scale = float(math.sqrt(in_dim))          # torch: sqrt(x.shape[1])
    out_bytes = jnp.dtype(out_dtype).itemsize

    x = x.astype(jnp.float32)                 # keep f32; bf16 cast is in-kernel

    # ---- batch tiling: multiple of 16; >=2 tiles when batch allows (v7x) ----
    tb = max(16, min(int(tb), _round_up(batch, 16)))
    tb = _round_up(tb, 16)
    if batch > 16 and pl.cdiv(batch, tb) < 2:
        tb = _round_up(pl.cdiv(batch, 2), 16)

    vmem_cap = _device_vmem_bytes()
    budget = int(0.9 * vmem_cap)              # ~10% headroom below physical VMEM

    # ---- resident weights vs h1-split decision ------------------------------
    weight_bytes = (in_dim * h1_pad + h1_pad * h2_pad) * 2 + h2_pad * 4
    use_split = force_h1_split or (weight_bytes > budget // 3)

    if use_split:
        chunk = int(h1_chunk) if h1_chunk is not None else _pick_h1_chunk(h1_pad)
        assert chunk % 128 == 0 and h1_pad % chunk == 0

        def est(tb_):
            return (2 * tb_ * in_dim * 4            # x tiles (f32, 2-buffered)
                    + 2 * in_dim * chunk * 2        # w1 chunks (bf16)
                    + 2 * chunk * h2_pad * 2        # w2 chunks (bf16)
                    + 2 * h2_pad * 4                # bias
                    + 2 * tb_ * h2_pad * out_bytes  # out tiles
                    + tb_ * h2_pad * 4              # accumulator scratch
                    + tb_ * (in_dim * 2 + chunk * 6 + h2_pad * 8))  # live temps
    else:
        def est(tb_):
            return (2 * tb_ * in_dim * 4
                    + 2 * tb_ * h2_pad * out_bytes
                    + 2 * weight_bytes              # conservative (2x) bound
                    + tb_ * (in_dim * 2 + h1_pad * 6 + h2_pad * 8))

    while tb > 16 and est(tb) > budget:
        tb = max(16, _round_up(tb // 2, 16))

    batch_pad = _round_up(batch, tb)
    if batch_pad != batch:
        x = jnp.pad(x, ((0, batch_pad - batch), (0, 0)))
    n_tiles = batch_pad // tb

    vmem_limit = int(min(budget, max(32 * 1024 * 1024, int(1.25 * est(tb)))))

    cost = pl.CostEstimate(
        flops=2 * batch_pad * (in_dim * h1_pad + h1_pad * h2_pad),
        transcendentals=batch_pad,
        bytes_accessed=(batch_pad * in_dim * 4 + weight_bytes
                        + batch_pad * h2_pad * out_bytes),
    )
    out_shape = jax.ShapeDtypeStruct((batch_pad, h2_pad), out_dtype)
    x_kwargs = ({} if x_buffers is None
                else dict(pipeline_mode=pl.Buffered(int(x_buffers))))

    if use_split:
        n_chunks = h1_pad // chunk
        out = pl.pallas_call(
            _split_kernel(scale),
            out_shape=out_shape,
            grid_spec=pltpu.PrefetchScalarGridSpec(
                num_scalar_prefetch=0,
                grid=(n_tiles, n_chunks),
                in_specs=[
                    pl.BlockSpec((tb, in_dim), lambda i, k: (i, 0), **x_kwargs),
                    pl.BlockSpec((in_dim, chunk), lambda i, k: (0, k)),
                    pl.BlockSpec((chunk, h2_pad), lambda i, k: (k, 0)),
                    pl.BlockSpec((1, h2_pad), lambda i, k: (0, 0)),
                ],
                out_specs=pl.BlockSpec((tb, h2_pad), lambda i, k: (i, 0)),
                scratch_shapes=[pltpu.VMEM((tb, h2_pad), jnp.float32)],
            ),
            compiler_params=pltpu.CompilerParams(
                dimension_semantics=("parallel", "arbitrary"),
                vmem_limit_bytes=vmem_limit),
            cost_estimate=cost,
        )(x, prep.w1, prep.w2, prep.b2)
        return out[:batch, :h2]

    def run_resident(single_buffer_weights):
        # Constant index_map -> the second pipeline buffer is pure waste;
        # request single buffering for the resident weights/bias.
        w_kwargs = (dict(pipeline_mode=pl.Buffered(1))
                    if single_buffer_weights else {})
        return pl.pallas_call(
            _resident_kernel(scale),
            out_shape=out_shape,
            grid_spec=pltpu.PrefetchScalarGridSpec(
                num_scalar_prefetch=0,
                grid=(n_tiles,),
                in_specs=[
                    pl.BlockSpec((tb, in_dim), lambda i: (i, 0), **x_kwargs),
                    pl.BlockSpec((in_dim, h1_pad), lambda i: (0, 0), **w_kwargs),
                    pl.BlockSpec((h1_pad, h2_pad), lambda i: (0, 0), **w_kwargs),
                    pl.BlockSpec((1, h2_pad), lambda i: (0, 0), **w_kwargs),
                ],
                out_specs=pl.BlockSpec((tb, h2_pad), lambda i: (i, 0)),
            ),
            compiler_params=pltpu.CompilerParams(
                dimension_semantics=("parallel",),
                vmem_limit_bytes=vmem_limit),
            cost_estimate=cost,
        )(x, prep.w1, prep.w2, prep.b2)

    global _SINGLE_BUFFER_WEIGHTS_OK
    if _SINGLE_BUFFER_WEIGHTS_OK is None:
        try:
            out = jax.block_until_ready(run_resident(True))
            _SINGLE_BUFFER_WEIGHTS_OK = True
        except Exception:
            # Installed Pallas rejects Buffered(1) here -> default buffering.
            _SINGLE_BUFFER_WEIGHTS_OK = False
            out = run_resident(False)
    else:
        out = run_resident(_SINGLE_BUFFER_WEIGHTS_OK)
    return out[:batch, :h2]


# ----------------------------- init & references -----------------------------

def init_params(key, in_dim, n_hidden_1, n_hidden_2):
    """Synthetic params matching nn.Linear init, stored as (in, out).

    l1 has no bias; l2_a has a bias.  (l2_b exists in the module but is unused
    in forward, so it is not instantiated.)"""
    ks = jax.random.split(key, 3)

    def uniform(k, shape, fan_in):
        bound = 1.0 / math.sqrt(fan_in)
        return jax.random.uniform(k, shape, jnp.float32, -bound, bound)

    w1 = uniform(ks[0], (in_dim, n_hidden_1), in_dim)
    w2 = uniform(ks[1], (n_hidden_1, n_hidden_2), n_hidden_1)
    b2 = uniform(ks[2], (n_hidden_2,), n_hidden_1)
    return (w1, w2, b2)


def _ref_forward_f32(x, params):
    """Pure-JAX f32 reference of the PyTorch forward."""
    w1, w2, b2 = params
    scale = math.sqrt(x.shape[1])
    h = jnp.maximum(x @ w1, 0.0)
    y = h @ w2 + jnp.reshape(b2, (1, -1))
    n = jnp.sqrt(jnp.sum(y * y, axis=-1, keepdims=True))
    return y / jnp.maximum(n, 1e-12) * scale


def _ref_forward_bf16(x, params):
    """Reference matching the kernel's numerics (bf16 operands, f32 acc)."""
    w1, w2, b2 = params
    scale = math.sqrt(x.shape[1])
    h = jnp.dot(x.astype(jnp.bfloat16), w1.astype(jnp.bfloat16),
                preferred_element_type=jnp.float32)
    h = jnp.maximum(h, 0.0)
    y = jnp.dot(h.astype(jnp.bfloat16), w2.astype(jnp.bfloat16),
                preferred_element_type=jnp.float32) + jnp.reshape(b2, (1, -1))
    n = jnp.sqrt(jnp.sum(y * y, axis=-1, keepdims=True))
    return y / jnp.maximum(n, 1e-12) * scale


if __name__ == "__main__":
    key = jax.random.PRNGKey(0)
    kx, kp, kx2, kp2 = jax.random.split(key, 4)

    # --- Test 1: resident-weight path (small shapes from the module) --------
    batch, in_dim, h1, h2 = 8, 32, 64, 32
    x = jax.random.normal(kx, (batch, in_dim), jnp.float32)
    params = init_params(kp, in_dim, h1, h2)
    prep = prepare_params(params)            # one-time pad/cast, hoisted

    out = diff_dnn_forward(x, prep)
    out = jax.block_until_ready(out)
    assert out.shape == (batch, h2)
    assert jnp.allclose(out, _ref_forward_bf16(x, params), atol=1e-2, rtol=1e-2), \
        "resident path: mismatch vs bf16-operand reference"
    assert jnp.allclose(out, _ref_forward_f32(x, params), atol=7e-2, rtol=7e-2), \
        "resident path: mismatch vs f32 reference"

    # --- Test 2: h1-split accumulator path, forced at small shapes ----------
    batch2, in_dim2, h1b, h2b = 48, 32, 256, 40
    x2 = jax.random.normal(kx2, (batch2, in_dim2), jnp.float32)
    params2 = init_params(kp2, in_dim2, h1b, h2b)
    out2 = diff_dnn_forward(x2, prepare_params(params2),
                            force_h1_split=True, h1_chunk=128)
    out2 = jax.block_until_ready(out2)
    assert out2.shape == (batch2, h2b)
    assert jnp.allclose(out2, _ref_forward_bf16(x2, params2), atol=1e-2, rtol=1e-2), \
        "split path: mismatch vs bf16-operand reference"
    assert jnp.allclose(out2, _ref_forward_f32(x2, params2), atol=7e-2, rtol=7e-2), \
        "split path: mismatch vs f32 reference"

    print("KERNEL_OK")
</pallas_src>

<mosaic_0001>
module attributes {stable_mosaic.version = 11 : i64} {
  func.func @kernel(%arg0: i32, %arg1: memref<16x32xf32, #tpu.memory_space<vmem>>, %arg2: memref<32x128xbf16, #tpu.memory_space<vmem>>, %arg3: memref<128x128xbf16, #tpu.memory_space<vmem>>, %arg4: memref<1x128xf32, #tpu.memory_space<vmem>>, %arg5: memref<16x128xf32, #tpu.memory_space<vmem>>) attributes {dimension_semantics = [#tpu.dimension_semantics<parallel>], iteration_bounds = array<i64: 1>, scalar_prefetch = 0 : i64, scratch_operands = 0 : i64, tpu.core_type = #tpu.core_type<tc>, window_params = [{transform_indices = @transform_0, window_bounds = array<i64: 16, 32>}, {pipeline_mode = #tpu.pipeline_mode<synchronous>, transform_indices = @transform_1, window_bounds = array<i64: 32, 128>}, {pipeline_mode = #tpu.pipeline_mode<synchronous>, transform_indices = @transform_2, window_bounds = array<i64: 128, 128>}, {pipeline_mode = #tpu.pipeline_mode<synchronous>, transform_indices = @transform_3, window_bounds = array<i64: 1, 128>}, {transform_indices = @transform_4, window_bounds = array<i64: 16, 128>}]} {
    %c0 = arith.constant 0 : index
    %c0_0 = arith.constant 0 : index
    %0 = vector.load %arg1[%c0, %c0_0] : memref<16x32xf32, #tpu.memory_space<vmem>>, vector<16x32xf32>
    %1 = arith.truncf %0 : vector<16x32xf32> to vector<16x32xbf16>
    %c0_1 = arith.constant 0 : index
    %c0_2 = arith.constant 0 : index
    %2 = vector.load %arg2[%c0_1, %c0_2] : memref<32x128xbf16, #tpu.memory_space<vmem>>, vector<32x128xbf16>
    %cst = arith.constant dense<0.000000e+00> : vector<16x128xf32>
    %3 = tpu.matmul %1, %2, %cst {dimension_numbers = #tpu.dot_dimension_numbers<[1], [0], [0], [1], [0, 0, 1, 1], [], []>} : vector<16x32xbf16>, vector<32x128xbf16>, vector<16x128xf32> -> vector<16x128xf32>
    %cst_3 = arith.constant 0.000000e+00 : f32
    %4 = vector.broadcast %cst_3 : f32 to vector<16x128xf32>
    %5 = arith.maximumf %3, %4 : vector<16x128xf32>
    %6 = arith.truncf %5 : vector<16x128xf32> to vector<16x128xbf16>
    %c0_4 = arith.constant 0 : index
    %c0_5 = arith.constant 0 : index
    %7 = vector.load %arg3[%c0_4, %c0_5] : memref<128x128xbf16, #tpu.memory_space<vmem>>, vector<128x128xbf16>
    %cst_6 = arith.constant dense<0.000000e+00> : vector<16x128xf32>
    %8 = tpu.matmul %6, %7, %cst_6 {dimension_numbers = #tpu.dot_dimension_numbers<[1], [0], [0], [1], [0, 0, 1, 1], [], []>} : vector<16x128xbf16>, vector<128x128xbf16>, vector<16x128xf32> -> vector<16x128xf32>
    %c0_7 = arith.constant 0 : index
    %c0_8 = arith.constant 0 : index
    %9 = vector.load %arg4[%c0_7, %c0_8] : memref<1x128xf32, #tpu.memory_space<vmem>>, vector<1x128xf32>
    %10 = vector.broadcast %9 : vector<1x128xf32> to vector<16x128xf32>
    %11 = arith.addf %8, %10 : vector<16x128xf32>
    %12 = arith.mulf %11, %11 : vector<16x128xf32>
    %cst_9 = arith.constant dense<0.000000e+00> : vector<16xf32>
    %13 = vector.multi_reduction <add>, %12, %cst_9 [1] : vector<16x128xf32> to vector<16xf32>
    %14 = vector.shape_cast %13 : vector<16xf32> to vector<16x1xf32>
    %cst_10 = arith.constant 1.000000e-24 : f32
    %15 = vector.broadcast %cst_10 : f32 to vector<16x1xf32>
    %16 = arith.maximumf %14, %15 : vector<16x1xf32>
    %17 = math.rsqrt %16 : vector<16x1xf32>
    %cst_11 = arith.constant 5.65685415 : f32
    %18 = vector.broadcast %cst_11 : f32 to vector<16x1xf32>
    %19 = arith.mulf %17, %18 : vector<16x1xf32>
    %20 = vector.broadcast %19 : vector<16x1xf32> to vector<16x128xf32>
    %21 = arith.mulf %11, %20 : vector<16x128xf32>
    %c0_12 = arith.constant 0 : index
    %c0_13 = arith.constant 0 : index
    %22 = vector.load %arg5[%c0_12, %c0_13] : memref<16x128xf32, #tpu.memory_space<vmem>>, vector<16x128xf32>
    tpu.vector_store %arg5[%c0_12, %c0_13], %21 {strides = array<i32>} : memref<16x128xf32, #tpu.memory_space<vmem>>, vector<16x128xf32>,
    return
  }
  func.func @transform_0(%arg0: i32) -> (i32, i32) {
    %c0_i32 = arith.constant 0 : i32
    %c0_i32_0 = arith.constant 0 : i32
    return %arg0, %c0_i32 : i32, i32
  }
  func.func @transform_1(%arg0: i32) -> (i32, i32) {
    %c0_i32 = arith.constant 0 : i32
    %c0_i32_0 = arith.constant 0 : i32
    %c0_i32_1 = arith.constant 0 : i32
    return %c0_i32, %c0_i32_0 : i32, i32
  }
  func.func @transform_2(%arg0: i32) -> (i32, i32) {
    %c0_i32 = arith.constant 0 : i32
    %c0_i32_0 = arith.constant 0 : i32
    %c0_i32_1 = arith.constant 0 : i32
    return %c0_i32, %c0_i32_0 : i32, i32
  }
  func.func @transform_3(%arg0: i32) -> (i32, i32) {
    %c0_i32 = arith.constant 0 : i32
    %c0_i32_0 = arith.constant 0 : i32
    %c0_i32_1 = arith.constant 0 : i32
    return %c0_i32, %c0_i32_0 : i32, i32
  }
  func.func @transform_4(%arg0: i32) -> (i32, i32) {
    %c0_i32 = arith.constant 0 : i32
    %c0_i32_0 = arith.constant 0 : i32
    return %arg0, %c0_i32 : i32, i32
  }
}

module attributes {stable_mosaic.version = 11 : i64} {
  func.func @kernel(%arg0: i32, %arg1: memref<16x32xf32, #tpu.memory_space<vmem>>, %arg2: memref<32x128xbf16, #tpu.memory_space<vmem>>, %arg3: memref<128x128xbf16, #tpu.memory_space<vmem>>, %arg4: memref<1x128xf32, #tpu.memory_space<vmem>>, %arg5: memref<16x128xf32, #tpu.memory_space<vmem>>) attributes {dimension_semantics = [#tpu.dimension_semantics<parallel>], iteration_bounds = array<i64: 1>, scalar_prefetch = 0 : i64, scratch_operands = 0 : i64, tpu.core_type = #tpu.core_type<tc>, window_params = [{transform_indices = @transform_0, window_bounds = array<i64: 16, 32>}, {pipeline_mode = #tpu.pipeline_mode<synchronous>, transform_indices = @transform_1, window_bounds = array<i64: 32, 128>}, {pipeline_mode = #tpu.pipeline_mode<synchronous>, transform_indices = @transform_2, window_bounds = array<i64: 128, 128>}, {pipeline_mode = #tpu.pipeline_mode<synchronous>, transform_indices = @transform_3, window_bounds = array<i64: 1, 128>}, {transform_indices = @transform_4, window_bounds = array<i64: 16, 128>}]} {
    %c0 = arith.constant 0 : index
    %c0_0 = arith.constant 0 : index
    %0 = vector.load %arg1[%c0, %c0_0] : memref<16x32xf32, #tpu.memory_space<vmem>>, vector<16x32xf32>
    %1 = arith.truncf %0 : vector<16x32xf32> to vector<16x32xbf16>
    %c0_1 = arith.constant 0 : index
    %c0_2 = arith.constant 0 : index
    %2 = vector.load %arg2[%c0_1, %c0_2] : memref<32x128xbf16, #tpu.memory_space<vmem>>, vector<32x128xbf16>
    %cst = arith.constant dense<0.000000e+00> : vector<16x128xf32>
    %3 = tpu.matmul %1, %2, %cst {dimension_numbers = #tpu.dot_dimension_numbers<[1], [0], [0], [1], [0, 0, 1, 1], [], []>} : vector<16x32xbf16>, vector<32x128xbf16>, vector<16x128xf32> -> vector<16x128xf32>
    %cst_3 = arith.constant 0.000000e+00 : f32
    %4 = vector.broadcast %cst_3 : f32 to vector<16x128xf32>
    %5 = arith.maximumf %3, %4 : vector<16x128xf32>
    %6 = arith.truncf %5 : vector<16x128xf32> to vector<16x128xbf16>
    %c0_4 = arith.constant 0 : index
    %c0_5 = arith.constant 0 : index
    %7 = vector.load %arg3[%c0_4, %c0_5] : memref<128x128xbf16, #tpu.memory_space<vmem>>, vector<128x128xbf16>
    %cst_6 = arith.constant dense<0.000000e+00> : vector<16x128xf32>
    %8 = tpu.matmul %6, %7, %cst_6 {dimension_numbers = #tpu.dot_dimension_numbers<[1], [0], [0], [1], [0, 0, 1, 1], [], []>} : vector<16x128xbf16>, vector<128x128xbf16>, vector<16x128xf32> -> vector<16x128xf32>
    %c0_7 = arith.constant 0 : index
    %c0_8 = arith.constant 0 : index
    %9 = vector.load %arg4[%c0_7, %c0_8] : memref<1x128xf32, #tpu.memory_space<vmem>>, vector<1x128xf32>
    %10 = vector.broadcast %9 : vector<1x128xf32> to vector<16x128xf32>
    %11 = arith.addf %8, %10 : vector<16x128xf32>
    %12 = arith.mulf %11, %11 : vector<16x128xf32>
    %cst_9 = arith.constant dense<0.000000e+00> : vector<16xf32>
    %13 = vector.multi_reduction <add>, %12, %cst_9 [1] : vector<16x128xf32> to vector<16xf32>
    %14 = vector.shape_cast %13 : vector<16xf32> to vector<16x1xf32>
    %cst_10 = arith.constant 1.000000e-24 : f32
    %15 = vector.broadcast %cst_10 : f32 to vector<16x1xf32>
    %16 = arith.maximumf %14, %15 : vector<16x1xf32>
    %17 = math.rsqrt %16 : vector<16x1xf32>
    %cst_11 = arith.constant 5.65685415 : f32
    %18 = vector.broadcast %cst_11 : f32 to vector<16x1xf32>
    %19 = arith.mulf %17, %18 : vector<16x1xf32>
    %20 = vector.broadcast %19 : vector<16x1xf32> to vector<16x128xf32>
    %21 = arith.mulf %11, %20 : vector<16x128xf32>
    %c0_12 = arith.constant 0 : index
    %c0_13 = arith.constant 0 : index
    %22 = vector.load %arg5[%c0_12, %c0_13] : memref<16x128xf32, #tpu.memory_space<vmem>>, vector<16x128xf32>
    tpu.vector_store %arg5[%c0_12, %c0_13], %21 {strides = array<i32>} : memref<16x128xf32, #tpu.memory_space<vmem>>, vector<16x128xf32>,
    return
  }
  func.func @transform_0(%arg0: i32) -> (i32, i32) {
    %c0_i32 = arith.constant 0 : i32
    %c0_i32_0 = arith.constant 0 : i32
    return %arg0, %c0_i32 : i32, i32
  }
  func.func @transform_1(%arg0: i32) -> (i32, i32) {
    %c0_i32 = arith.constant 0 : i32
    %c0_i32_0 = arith.constant 0 : i32
    %c0_i32_1 = arith.constant 0 : i32
    return %c0_i32, %c0_i32_0 : i32, i32
  }
  func.func @transform_2(%arg0: i32) -> (i32, i32) {
    %c0_i32 = arith.constant 0 : i32
    %c0_i32_0 = arith.constant 0 : i32
    %c0_i32_1 = arith.constant 0 : i32
    return %c0_i32, %c0_i32_0 : i32, i32
  }
  func.func @transform_3(%arg0: i32) -> (i32, i32) {
    %c0_i32 = arith.constant 0 : i32
    %c0_i32_0 = arith.constant 0 : i32
    %c0_i32_1 = arith.constant 0 : i32
    return %c0_i32, %c0_i32_0 : i32, i32
  }
  func.func @transform_4(%arg0: i32) -> (i32, i32) {
    %c0_i32 = arith.constant 0 : i32
    %c0_i32_0 = arith.constant 0 : i32
    return %arg0, %c0_i32 : i32, i32
  }
}

</mosaic_0001>

<llo_original>
// kernel: tpu_custom_call.1
$region0: #{tpu_custom_call.1}
  #allocation0 [shape = 'u32[]', space=smem, size = 0x4, offset = 0x4, fixed_abs, tag = 'smem constant byte address 0x4 - core index']
  #allocation1 [shape = 'u32[144,128]{1,0:T(1,128)}', space=vmem, size = 0x12000, scoped, tag = 'internal scratch']
  %s0 = inlined_call_operand.hbm [shape: f32[16,32], index: 0, kind: input, shape index: {}]
  %s1 = inlined_call_operand.hbm [shape: bf16[32,128], index: 1, kind: input, shape index: {}]
  %s2 = inlined_call_operand.hbm [shape: bf16[128,128], index: 2, kind: input, shape index: {}]
  %s3 = inlined_call_operand.vmem [shape: f32[1,128], index: 3, kind: input, shape index: {}]
  %s4 = inlined_call_operand.hbm [shape: f32[16,128], index: 4, kind: output, shape index: {}]
  %s5 = sld [smem:[#allocation0]]
  $region38: #{tpu_custom_call.1} parent=0
    _
  %s7 = ssub.s32 1, %s5
  %s8 = scalar_select 0, %s7, %s5
  $region1: #{tpu_custom_call.1} parent=0
    #allocation2 [shape = 'u8[8192]{0}', space=vmem, size = 0x2000, scoped, tag = 'input window, operand 0, single buffered']
    #allocation3 [shape = 's32[1]{0}', space=sflag, size = 0x4, scoped, tag = 'scoped memory for tpu_custom_call.1']
    #allocation4 [shape = 's32[1]{0}', space=sflag, size = 0x4, scoped, tag = 'scoped memory for tpu_custom_call.1']
    #allocation5 [shape = 'u8[8192]{0}', space=vmem, size = 0x2000, scoped, tag = 'input window, operand 1, single buffered']
    #allocation6 [shape = 's32[1]{0}', space=sflag, size = 0x4, scoped, tag = 'scoped memory for tpu_custom_call.1']
    #allocation7 [shape = 'u8[32768]{0}', space=vmem, size = 0x8000, scoped, tag = 'input window, operand 2, single buffered']
    #allocation8 [shape = 'u8[8192]{0}', space=vmem, size = 0x2000, scoped, tag = 'output window, operand 0, single buffered']
    %9 = vsyncpa [#allocation3], 0
    %10 = vsyncpa [#allocation6], 0
    %11 = vsyncpa [#allocation4], 0
    // Predicated region
    $region2: #{tpu_custom_call.1} parent=1 // pred_check
      _
    $region3: #{tpu_custom_call.1} parent=1 // pred_check_branch
      %13 = sbr.rel (0) target = $region5
    $region4: #{tpu_custom_call.1} parent=1 // pred_region
      %s15 = ssub.s32 256, 256
      %16 = vsyncadd [#allocation3], %s15
      %s17 = sshll.u32 [#allocation2], 4
      %s18 = int_to_ptr.vmem [resolvable:$true] %s17
      %23 = dma.hbm_to_vmem [thread:$0]  %s0, 256, %s18, [#allocation3], 128, 128, 8
    $region5: #{tpu_custom_call.1} parent=1 // pred_fallthru
      _
    // Predicated region
    $region6: #{tpu_custom_call.1} parent=1 // pred_check
      _
    $region7: #{tpu_custom_call.1} parent=1 // pred_check_branch
      %25 = sbr.rel (0) target = $region9
    $region8: #{tpu_custom_call.1} parent=1 // pred_region
      %s27 = ssub.s32 256, 256
      %28 = vsyncadd [#allocation6], %s27
      %s29 = sshll.u32 [#allocation5], 4
      %s30 = int_to_ptr.vmem [resolvable:$true] %s29
      %35 = dma.hbm_to_vmem [thread:$0]  %s1, 256, %s30, [#allocation6], 64, 64, 4
    $region9: #{tpu_custom_call.1} parent=1 // pred_fallthru
      _
    // Predicated region
    $region10: #{tpu_custom_call.1} parent=1 // pred_check
      _
    $region11: #{tpu_custom_call.1} parent=1 // pred_check_branch
      %37 = sbr.rel (0) target = $region13
    $region12: #{tpu_custom_call.1} parent=1 // pred_region
      %s39 = ssub.s32 1024, 1024
      %40 = vsyncadd [#allocation6], %s39
      %s41 = sshll.u32 [#allocation7], 4
      %s42 = int_to_ptr.vmem [resolvable:$true] %s41
      %47 = dma.hbm_to_vmem [thread:$0]  %s2, 1024, %s42, [#allocation6], 64, 64, 4
    $region13: #{tpu_custom_call.1} parent=1 // pred_fallthru
      _
    // Predicated region
    $region14: #{tpu_custom_call.1} parent=1 // pred_check
      _
    $region15: #{tpu_custom_call.1} parent=1 // pred_check_branch
      %49 = sbr.rel (0) target = $region17
    $region16: #{tpu_custom_call.1} parent=1 // pred_region
      _
    $region17: #{tpu_custom_call.1} parent=1 // pred_fallthru
      _
    // Predicated region
    $region18: #{tpu_custom_call.1} parent=1 // pred_check
      _
    $region19: #{tpu_custom_call.1} parent=1 // pred_check_branch
      %51 = sbr.rel (0) target = $region21
    $region20: #{tpu_custom_call.1} parent=1 // pred_region
      %52 = dma.done [#allocation3], 256
    $region21: #{tpu_custom_call.1} parent=1 // pred_fallthru
      _
    // Predicated region
    $region22: #{tpu_custom_call.1} parent=1 // pred_check
      _
    $region23: #{tpu_custom_call.1} parent=1 // pred_check_branch
      %54 = sbr.rel (0) target = $region25
    $region24: #{tpu_custom_call.1} parent=1 // pred_region
      %55 = dma.done [#allocation6], 256
    $region25: #{tpu_custom_call.1} parent=1 // pred_fallthru
      _
    // Predicated region
    $region26: #{tpu_custom_call.1} parent=1 // pred_check
      _
    $region27: #{tpu_custom_call.1} parent=1 // pred_check_branch
      %57 = sbr.rel (0) target = $region29
    $region28: #{tpu_custom_call.1} parent=1 // pred_region
      %58 = dma.done [#allocation6], 1024
    $region29: #{tpu_custom_call.1} parent=1 // pred_fallthru
      _
    %v60 = vld [vmem:[#allocation2] sm:$0xff]
    %v61 = vld [vmem:[#allocation2 + $0x8] sm:$0xff]
    %v62 = vpack.c.bf16 %v61, %v60
    %v63 = vld [vmem:[#allocation5] sm:$0xf]
    %v64 = vld [vmem:[#allocation5 + $0x4] sm:$0xf]
    %v65 = vld [vmem:[#allocation5 + $0x8] sm:$0xf]
    %v66 = vld [vmem:[#allocation5 + $0xc] sm:$0xf]
    %v71 = vunpack.c.l.b16 %v63
    %v72 = vunpack.c.l.b16 %v64
    %v73 = vunpack.c.l.b16 %v65
    %v74 = vunpack.c.l.b16 %v66
    %v75 = vpack.c.b16 %v72, %v71
    %v76 = vpack.c.b16 %v74, %v73
    %vm79 = vcmask 261120
    %v81 = vsel %vm79, %v62, 0
    %83 = vmatprep.subr.bf16.mxu0 0
    %84 = vmatpush1.bf16.msra.mxu0 %v75
    %85 = vmatprep.subr.bf16.mxu0 0
    %86 = vmatpush1.bf16.msra.mxu0 %v76
    %87 = vmatprep.subr.bf16.mxu0 0
    %88 = vmatpush1.bf16.msra.mxu0 0
    %89 = vmatprep.subr.bf16.mxu0 0
    %90 = vmatpush1.bf16.msra.mxu0 0
    %91 = vmatprep.subr.bf16.mxu0 0
    %92 = vmatpush1.bf16.msra.mxu0 0
    %93 = vmatprep.subr.bf16.mxu0 0
    %94 = vmatpush1.bf16.msra.mxu0 0
    %95 = vmatprep.subr.bf16.mxu0 0
    %96 = vmatpush1.bf16.msra.mxu0 0
    %97 = vmatprep.subr.bf16.mxu0 0
    %98 = vmatpush1.bf16.msra.mxu0 0
    %99 = vmatprep.subr.bf16.mxu0 0
    %100 = vmatpush1.bf16.msra.mxu0 0
    %101 = vmatprep.subr.bf16.mxu0 0
    %102 = vmatpush1.bf16.msra.mxu0 0
    %103 = vmatprep.subr.bf16.mxu0 0
    %104 = vmatpush1.bf16.msra.mxu0 0
    %105 = vmatprep.subr.bf16.mxu0 0
    %106 = vmatpush1.bf16.msra.mxu0 0
    %107 = vmatprep.subr.bf16.mxu0 0
    %108 = vmatpush1.bf16.msra.mxu0 0
    %109 = vmatprep.subr.bf16.mxu0 0
    %110 = vmatpush1.bf16.msra.mxu0 0
    %111 = vmatprep.subr.bf16.mxu0 0
    %112 = vmatpush1.bf16.msra.mxu0 0
    %113 = vmatprep.subr.bf16.mxu0 0
    %114 = vmatpush1.bf16.msra.mxu0 0
    %115 = vmatprep.mubr.bf16.mxu0 0
    %116 = vmatmul.mubr.bf16.gmra.mrb[0].mxu0 %v81
    %v117 = vpop.f32.mrb[0].mxu0
    %v118 = vadd.f32 0.0, %v117
    %v119 = vpop.f32.mrb[0].mxu0
    %v120 = vpop.f32.mrb[0].mxu0
    %v121 = vadd.f32 0.0, %v120
    %v122 = vpop.f32.mrb[0].mxu0
    %123 = vdwg.mxu0
    %v124 = vmax.f32 %v118, 0.0
    %v125 = vmax.f32 %v121, 0.0
    %v126 = vpack.c.bf16 %v125, %v124
    %v127 = vld [vmem:[#allocation7] sm:$0xf]
    %v128 = vld [vmem:[#allocation7 + $0x4] sm:$0xf]
    %v129 = vld [vmem:[#allocation7 + $0x8] sm:$0xf]
    %v130 = vld [vmem:[#allocation7 + $0xc] sm:$0xf]
    %v131 = vld [vmem:[#allocation7 + $0x10] sm:$0xf]
    %v132 = vld [vmem:[#allocation7 + $0x14] sm:$0xf]
    %v133 = vld [vmem:[#allocation7 + $0x18] sm:$0xf]
    %v134 = vld [vmem:[#allocation7 + $0x1c] sm:$0xf]
    %v135 = vld [vmem:[#allocation7 + $0x20] sm:$0xf]
    %v136 = vld [vmem:[#allocation7 + $0x24] sm:$0xf]
    %v137 = vld [vmem:[#allocation7 + $0x28] sm:$0xf]
    %v138 = vld [vmem:[#allocation7 + $0x2c] sm:$0xf]
    %v139 = vld [vmem:[#allocation7 + $0x30] sm:$0xf]
    %v140 = vld [vmem:[#allocation7 + $0x34] sm:$0xf]
    %v141 = vld [vmem:[#allocation7 + $0x38] sm:$0xf]
    %v142 = vld [vmem:[#allocation7 + $0x3c] sm:$0xf]
    %v143 = vld [vmem:[%s3] sm:$0x1]
    %v145 = vlaneseq
    %v146 = vshrl.u32 %v145, 7
    %v147 = vsub.s32 0, %v146
    %v148 = vrot.slane %v143, %v147
    %v166 = vunpack.c.l.b16 %v127
    %v167 = vunpack.c.l.b16 %v128
    %v168 = vunpack.c.l.b16 %v129
    %v169 = vunpack.c.l.b16 %v130
    %v170 = vunpack.c.l.b16 %v131
    %v171 = vunpack.c.l.b16 %v132
    %v172 = vunpack.c.l.b16 %v133
    %v173 = vunpack.c.l.b16 %v134
    %v174 = vunpack.c.l.b16 %v135
    %v175 = vunpack.c.l.b16 %v136
    %v176 = vunpack.c.l.b16 %v137
    %v177 = vunpack.c.l.b16 %v138
    %v178 = vunpack.c.l.b16 %v139
    %v179 = vunpack.c.l.b16 %v140
    %v180 = vunpack.c.l.b16 %v141
    %v181 = vunpack.c.l.b16 %v142
    %v182 = vpack.c.b16 %v167, %v166
    %v183 = vpack.c.b16 %v169, %v168
    %v184 = vpack.c.b16 %v171, %v170
    %v185 = vpack.c.b16 %v173, %v172
    %v186 = vpack.c.b16 %v175, %v174
    %v187 = vpack.c.b16 %v177, %v176
    %v188 = vpack.c.b16 %v179, %v178
    %v189 = vpack.c.b16 %v181, %v180
    %198 = vmatprep.subr.bf16.mxu0 0
    %199 = vmatpush1.bf16.msra.mxu0 %v182
    %200 = vmatprep.subr.bf16.mxu0 0
    %201 = vmatpush1.bf16.msra.mxu0 %v183
    %202 = vmatprep.subr.bf16.mxu0 0
    %203 = vmatpush1.bf16.msra.mxu0 %v184
    %204 = vmatprep.subr.bf16.mxu0 0
    %205 = vmatpush1.bf16.msra.mxu0 %v185
    %206 = vmatprep.subr.bf16.mxu0 0
    %207 = vmatpush1.bf16.msra.mxu0 %v186
    %208 = vmatprep.subr.bf16.mxu0 0
    %209 = vmatpush1.bf16.msra.mxu0 %v187
    %210 = vmatprep.subr.bf16.mxu0 0
    %211 = vmatpush1.bf16.msra.mxu0 %v188
    %212 = vmatprep.subr.bf16.mxu0 0
    %213 = vmatpush1.bf16.msra.mxu0 %v189
    %214 = vmatprep.subr.bf16.mxu0 0
    %215 = vmatpush1.bf16.msra.mxu0 0
    %216 = vmatprep.subr.bf16.mxu0 0
    %217 = vmatpush1.bf16.msra.mxu0 0
    %218 = vmatprep.subr.bf16.mxu0 0
    %219 = vmatpush1.bf16.msra.mxu0 0
    %220 = vmatprep.subr.bf16.mxu0 0
    %221 = vmatpush1.bf16.msra.mxu0 0
    %222 = vmatprep.subr.bf16.mxu0 0
    %223 = vmatpush1.bf16.msra.mxu0 0
    %224 = vmatprep.subr.bf16.mxu0 0
    %225 = vmatpush1.bf16.msra.mxu0 0
    %226 = vmatprep.subr.bf16.mxu0 0
    %227 = vmatpush1.bf16.msra.mxu0 0
    %228 = vmatprep.subr.bf16.mxu0 0
    %229 = vmatpush1.bf16.msra.mxu0 0
    %230 = vmatprep.mubr.bf16.mxu0 0
    %231 = vmatmul.mubr.bf16.gmra.mrb[0].mxu0 %v126
    %v232 = vpop.f32.mrb[0].mxu0
    %v233 = vadd.f32 %v148, %v232
    %v234 = vpop.f32.mrb[0].mxu0
    %v235 = vpop.f32.mrb[0].mxu0
    %v236 = vadd.f32 %v148, %v235
    %v237 = vpop.f32.mrb[0].mxu0
    %238 = vdwg.mxu0
    %v239 = vmul.f32 %v233, %v233
    %v240 = vmul.f32 %v236, %v236
    %241 = vadd.xlane.f32.xlu0 %v239
    %v242 = vpop.xlane.xlu0 %241
    %243 = vadd.xlane.f32.xlu0 %v240
    %v244 = vpop.xlane.xlu0 %243
    %v245 = vmax.f32 %v242, 1e-24
    %v246 = vmax.f32 %v244, 1e-24
    %v247 = vrsqrt.pop %v245
    %v248 = vrsqrt.pop %v246
    %v249 = vmul.f32 %v247, 5.656854
    %v250 = vmul.f32 %v248, 5.656854
    %v251 = vmul.f32 %v233, %v249
    %v252 = vmul.f32 %v236, %v250
    %253 = vst [vmem:[#allocation8] sm:$0xff] %v251
    %254 = vst [vmem:[#allocation8 + $0x8] sm:$0xff] %v252
    // Predicated region
    $region30: #{tpu_custom_call.1} parent=1 // pred_check
      _
    $region31: #{tpu_custom_call.1} parent=1 // pred_check_branch
      %256 = sbr.rel (0) target = $region33
    $region32: #{tpu_custom_call.1} parent=1 // pred_region
      %s258 = ssub.s32 256, 256
      %259 = vsyncadd [#allocation4], %s258
      %s260 = sshll.u32 [#allocation8], 4
      %s261 = int_to_ptr.vmem [resolvable:$true] %s260
      %266 = dma.vmem_to_hbm [thread:$0]  %s261, 256, %s4, [#allocation4], 128, 128, 8
    $region33: #{tpu_custom_call.1} parent=1 // pred_fallthru
      _
    // Predicated region
    $region34: #{tpu_custom_call.1} parent=1 // pred_check
      _
    $region35: #{tpu_custom_call.1} parent=1 // pred_check_branch
      %268 = sbr.rel (0) target = $region37
    $region36: #{tpu_custom_call.1} parent=1 // pred_region
      %269 = dma.done [#allocation4], 256
    $region37: #{tpu_custom_call.1} parent=1 // pred_fallthru
      _
    %270 = vsyncpa [#allocation3], 1
    %271 = vsyncpa [#allocation6], 1
    %272 = vsyncpa [#allocation4], 1

// kernel: tpu_custom_call.1
$region0: #{tpu_custom_call.1}
  #allocation0 [shape = 'u32[]', space=smem, size = 0x4, offset = 0x4, fixed_abs, tag = 'smem constant byte address 0x4 - core index']
  #allocation1 [shape = 'u32[144,128]{1,0:T(1,128)}', space=vmem, size = 0x12000, scoped, tag = 'internal scratch']
  %s0 = inlined_call_operand.hbm [shape: f32[16,32], index: 0, kind: input, shape index: {}]
  %s1 = inlined_call_operand.hbm [shape: bf16[32,128], index: 1, kind: input, shape index: {}]
  %s2 = inlined_call_operand.hbm [shape: bf16[128,128], index: 2, kind: input, shape index: {}]
  %s3 = inlined_call_operand.vmem [shape: f32[1,128], index: 3, kind: input, shape index: {}]
  %s4 = inlined_call_operand.hbm [shape: f32[16,128], index: 4, kind: output, shape index: {}]
  %s5 = sld [smem:[#allocation0]]
  $region38: #{tpu_custom_call.1} parent=0
    _
  %s7 = ssub.s32 1, %s5
  %s8 = scalar_select 0, %s7, %s5
  $region1: #{tpu_custom_call.1} parent=0
    #allocation2 [shape = 'u8[8192]{0}', space=vmem, size = 0x2000, scoped, tag = 'input window, operand 0, single buffered']
    #allocation3 [shape = 's32[1]{0}', space=sflag, size = 0x4, scoped, tag = 'scoped memory for tpu_custom_call.1']
    #allocation4 [shape = 's32[1]{0}', space=sflag, size = 0x4, scoped, tag = 'scoped memory for tpu_custom_call.1']
    #allocation5 [shape = 'u8[8192]{0}', space=vmem, size = 0x2000, scoped, tag = 'input window, operand 1, single buffered']
    #allocation6 [shape = 's32[1]{0}', space=sflag, size = 0x4, scoped, tag = 'scoped memory for tpu_custom_call.1']
    #allocation7 [shape = 'u8[32768]{0}', space=vmem, size = 0x8000, scoped, tag = 'input window, operand 2, single buffered']
    #allocation8 [shape = 'u8[8192]{0}', space=vmem, size = 0x2000, scoped, tag = 'output window, operand 0, single buffered']
    %9 = vsyncpa [#allocation3], 0
    %10 = vsyncpa [#allocation6], 0
    %11 = vsyncpa [#allocation4], 0
    // Predicated region
    $region2: #{tpu_custom_call.1} parent=1 // pred_check
      _
    $region3: #{tpu_custom_call.1} parent=1 // pred_check_branch
      %13 = sbr.rel (0) target = $region5
    $region4: #{tpu_custom_call.1} parent=1 // pred_region
      %s15 = ssub.s32 256, 256
      %16 = vsyncadd [#allocation3], %s15
      %s17 = sshll.u32 [#allocation2], 4
      %s18 = int_to_ptr.vmem [resolvable:$true] %s17
      %23 = dma.hbm_to_vmem [thread:$0]  %s0, 256, %s18, [#allocation3], 128, 128, 8
    $region5: #{tpu_custom_call.1} parent=1 // pred_fallthru
      _
    // Predicated region
    $region6: #{tpu_custom_call.1} parent=1 // pred_check
      _
    $region7: #{tpu_custom_call.1} parent=1 // pred_check_branch
      %25 = sbr.rel (0) target = $region9
    $region8: #{tpu_custom_call.1} parent=1 // pred_region
      %s27 = ssub.s32 256, 256
      %28 = vsyncadd [#allocation6], %s27
      %s29 = sshll.u32 [#allocation5], 4
      %s30 = int_to_ptr.vmem [resolvable:$true] %s29
      %35 = dma.hbm_to_vmem [thread:$0]  %s1, 256, %s30, [#allocation6], 64, 64, 4
    $region9: #{tpu_custom_call.1} parent=1 // pred_fallthru
      _
    // Predicated region
    $region10: #{tpu_custom_call.1} parent=1 // pred_check
      _
    $region11: #{tpu_custom_call.1} parent=1 // pred_check_branch
      %37 = sbr.rel (0) target = $region13
    $region12: #{tpu_custom_call.1} parent=1 // pred_region
      %s39 = ssub.s32 1024, 1024
      %40 = vsyncadd [#allocation6], %s39
      %s41 = sshll.u32 [#allocation7], 4
      %s42 = int_to_ptr.vmem [resolvable:$true] %s41
      %47 = dma.hbm_to_vmem [thread:$0]  %s2, 1024, %s42, [#allocation6], 64, 64, 4
    $region13: #{tpu_custom_call.1} parent=1 // pred_fallthru
      _
    // Predicated region
    $region14: #{tpu_custom_call.1} parent=1 // pred_check
      _
    $region15: #{tpu_custom_call.1} parent=1 // pred_check_branch
      %49 = sbr.rel (0) target = $region17
    $region16: #{tpu_custom_call.1} parent=1 // pred_region
      _
    $region17: #{tpu_custom_call.1} parent=1 // pred_fallthru
      _
    // Predicated region
    $region18: #{tpu_custom_call.1} parent=1 // pred_check
      _
    $region19: #{tpu_custom_call.1} parent=1 // pred_check_branch
      %51 = sbr.rel (0) target = $region21
    $region20: #{tpu_custom_call.1} parent=1 // pred_region
      %52 = dma.done [#allocation3], 256
    $region21: #{tpu_custom_call.1} parent=1 // pred_fallthru
      _
    // Predicated region
    $region22: #{tpu_custom_call.1} parent=1 // pred_check
      _
    $region23: #{tpu_custom_call.1} parent=1 // pred_check_branch
      %54 = sbr.rel (0) target = $region25
    $region24: #{tpu_custom_call.1} parent=1 // pred_region
      %55 = dma.done [#allocation6], 256
    $region25: #{tpu_custom_call.1} parent=1 // pred_fallthru
      _
    // Predicated region
    $region26: #{tpu_custom_call.1} parent=1 // pred_check
      _
    $region27: #{tpu_custom_call.1} parent=1 // pred_check_branch
      %57 = sbr.rel (0) target = $region29
    $region28: #{tpu_custom_call.1} parent=1 // pred_region
      %58 = dma.done [#allocation6], 1024
    $region29: #{tpu_custom_call.1} parent=1 // pred_fallthru
      _
    %v60 = vld [vmem:[#allocation2] sm:$0xff]
    %v61 = vld [vmem:[#allocation2 + $0x8] sm:$0xff]
    %v62 = vpack.c.bf16 %v61, %v60
    %v63 = vld [vmem:[#allocation5] sm:$0xf]
    %v64 = vld [vmem:[#allocation5 + $0x4] sm:$0xf]
    %v65 = vld [vmem:[#allocation5 + $0x8] sm:$0xf]
    %v66 = vld [vmem:[#allocation5 + $0xc] sm:$0xf]
    %v71 = vunpack.c.l.b16 %v63
    %v72 = vunpack.c.l.b16 %v64
    %v73 = vunpack.c.l.b16 %v65
    %v74 = vunpack.c.l.b16 %v66
    %v75 = vpack.c.b16 %v72, %v71
    %v76 = vpack.c.b16 %v74, %v73
    %vm79 = vcmask 261120
    %v81 = vsel %vm79, %v62, 0
    %83 = vmatprep.subr.bf16.mxu0 0
    %84 = vmatpush1.bf16.msra.mxu0 %v75
    %85 = vmatprep.subr.bf16.mxu0 0
    %86 = vmatpush1.bf16.msra.mxu0 %v76
    %87 = vmatprep.subr.bf16.mxu0 0
    %88 = vmatpush1.bf16.msra.mxu0 0
    %89 = vmatprep.subr.bf16.mxu0 0
    %90 = vmatpush1.bf16.msra.mxu0 0
    %91 = vmatprep.subr.bf16.mxu0 0
    %92 = vmatpush1.bf16.msra.mxu0 0
    %93 = vmatprep.subr.bf16.mxu0 0
    %94 = vmatpush1.bf16.msra.mxu0 0
    %95 = vmatprep.subr.bf16.mxu0 0
    %96 = vmatpush1.bf16.msra.mxu0 0
    %97 = vmatprep.subr.bf16.mxu0 0
    %98 = vmatpush1.bf16.msra.mxu0 0
    %99 = vmatprep.subr.bf16.mxu0 0
    %100 = vmatpush1.bf16.msra.mxu0 0
    %101 = vmatprep.subr.bf16.mxu0 0
    %102 = vmatpush1.bf16.msra.mxu0 0
    %103 = vmatprep.subr.bf16.mxu0 0
    %104 = vmatpush1.bf16.msra.mxu0 0
    %105 = vmatprep.subr.bf16.mxu0 0
    %106 = vmatpush1.bf16.msra.mxu0 0
    %107 = vmatprep.subr.bf16.mxu0 0
    %108 = vmatpush1.bf16.msra.mxu0 0
    %109 = vmatprep.subr.bf16.mxu0 0
    %110 = vmatpush1.bf16.msra.mxu0 0
    %111 = vmatprep.subr.bf16.mxu0 0
    %112 = vmatpush1.bf16.msra.mxu0 0
    %113 = vmatprep.subr.bf16.mxu0 0
    %114 = vmatpush1.bf16.msra.mxu0 0
    %115 = vmatprep.mubr.bf16.mxu0 0
    %116 = vmatmul.mubr.bf16.gmra.mrb[0].mxu0 %v81
    %v117 = vpop.f32.mrb[0].mxu0
    %v118 = vadd.f32 0.0, %v117
    %v119 = vpop.f32.mrb[0].mxu0
    %v120 = vpop.f32.mrb[0].mxu0
    %v121 = vadd.f32 0.0, %v120
    %v122 = vpop.f32.mrb[0].mxu0
    %123 = vdwg.mxu0
    %v124 = vmax.f32 %v118, 0.0
    %v125 = vmax.f32 %v121, 0.0
    %v126 = vpack.c.bf16 %v125, %v124
    %v127 = vld [vmem:[#allocation7] sm:$0xf]
    %v128 = vld [vmem:[#allocation7 + $0x4] sm:$0xf]
    %v129 = vld [vmem:[#allocation7 + $0x8] sm:$0xf]
    %v130 = vld [vmem:[#allocation7 + $0xc] sm:$0xf]
    %v131 = vld [vmem:[#allocation7 + $0x10] sm:$0xf]
    %v132 = vld [vmem:[#allocation7 + $0x14] sm:$0xf]
    %v133 = vld [vmem:[#allocation7 + $0x18] sm:$0xf]
    %v134 = vld [vmem:[#allocation7 + $0x1c] sm:$0xf]
    %v135 = vld [vmem:[#allocation7 + $0x20] sm:$0xf]
    %v136 = vld [vmem:[#allocation7 + $0x24] sm:$0xf]
    %v137 = vld [vmem:[#allocation7 + $0x28] sm:$0xf]
    %v138 = vld [vmem:[#allocation7 + $0x2c] sm:$0xf]
    %v139 = vld [vmem:[#allocation7 + $0x30] sm:$0xf]
    %v140 = vld [vmem:[#allocation7 + $0x34] sm:$0xf]
    %v141 = vld [vmem:[#allocation7 + $0x38] sm:$0xf]
    %v142 = vld [vmem:[#allocation7 + $0x3c] sm:$0xf]
    %v143 = vld [vmem:[%s3] sm:$0x1]
    %v145 = vlaneseq
    %v146 = vshrl.u32 %v145, 7
    %v147 = vsub.s32 0, %v146
    %v148 = vrot.slane %v143, %v147
    %v166 = vunpack.c.l.b16 %v127
    %v167 = vunpack.c.l.b16 %v128
    %v168 = vunpack.c.l.b16 %v129
    %v169 = vunpack.c.l.b16 %v130
    %v170 = vunpack.c.l.b16 %v131
    %v171 = vunpack.c.l.b16 %v132
    %v172 = vunpack.c.l.b16 %v133
    %v173 = vunpack.c.l.b16 %v134
    %v174 = vunpack.c.l.b16 %v135
    %v175 = vunpack.c.l.b16 %v136
    %v176 = vunpack.c.l.b16 %v137
    %v177 = vunpack.c.l.b16 %v138
    %v178 = vunpack.c.l.b16 %v139
    %v179 = vunpack.c.l.b16 %v140
    %v180 = vunpack.c.l.b16 %v141
    %v181 = vunpack.c.l.b16 %v142
    %v182 = vpack.c.b16 %v167, %v166
    %v183 = vpack.c.b16 %v169, %v168
    %v184 = vpack.c.b16 %v171, %v170
    %v185 = vpack.c.b16 %v173, %v172
    %v186 = vpack.c.b16 %v175, %v174
    %v187 = vpack.c.b16 %v177, %v176
    %v188 = vpack.c.b16 %v179, %v178
    %v189 = vpack.c.b16 %v181, %v180
    %198 = vmatprep.subr.bf16.mxu0 0
    %199 = vmatpush1.bf16.msra.mxu0 %v182
    %200 = vmatprep.subr.bf16.mxu0 0
    %201 = vmatpush1.bf16.msra.mxu0 %v183
    %202 = vmatprep.subr.bf16.mxu0 0
    %203 = vmatpush1.bf16.msra.mxu0 %v184
    %204 = vmatprep.subr.bf16.mxu0 0
    %205 = vmatpush1.bf16.msra.mxu0 %v185
    %206 = vmatprep.subr.bf16.mxu0 0
    %207 = vmatpush1.bf16.msra.mxu0 %v186
    %208 = vmatprep.subr.bf16.mxu0 0
    %209 = vmatpush1.bf16.msra.mxu0 %v187
    %210 = vmatprep.subr.bf16.mxu0 0
    %211 = vmatpush1.bf16.msra.mxu0 %v188
    %212 = vmatprep.subr.bf16.mxu0 0
    %213 = vmatpush1.bf16.msra.mxu0 %v189
    %214 = vmatprep.subr.bf16.mxu0 0
    %215 = vmatpush1.bf16.msra.mxu0 0
    %216 = vmatprep.subr.bf16.mxu0 0
    %217 = vmatpush1.bf16.msra.mxu0 0
    %218 = vmatprep.subr.bf16.mxu0 0
    %219 = vmatpush1.bf16.msra.mxu0 0
    %220 = vmatprep.subr.bf16.mxu0 0
    %221 = vmatpush1.bf16.msra.mxu0 0
    %222 = vmatprep.subr.bf16.mxu0 0
    %223 = vmatpush1.bf16.msra.mxu0 0
    %224 = vmatprep.subr.bf16.mxu0 0
    %225 = vmatpush1.bf16.msra.mxu0 0
    %226 = vmatprep.subr.bf16.mxu0 0
    %227 = vmatpush1.bf16.msra.mxu0 0
    %228 = vmatprep.subr.bf16.mxu0 0
    %229 = vmatpush1.bf16.msra.mxu0 0
    %230 = vmatprep.mubr.bf16.mxu0 0
    %231 = vmatmul.mubr.bf16.gmra.mrb[0].mxu0 %v126
    %v232 = vpop.f32.mrb[0].mxu0
    %v233 = vadd.f32 %v148, %v232
    %v234 = vpop.f32.mrb[0].mxu0
    %v235 = vpop.f32.mrb[0].mxu0
    %v236 = vadd.f32 %v148, %v235
    %v237 = vpop.f32.mrb[0].mxu0
    %238 = vdwg.mxu0
    %v239 = vmul.f32 %v233, %v233
    %v240 = vmul.f32 %v236, %v236
    %241 = vadd.xlane.f32.xlu0 %v239
    %v242 = vpop.xlane.xlu0 %241
    %243 = vadd.xlane.f32.xlu0 %v240
    %v244 = vpop.xlane.xlu0 %243
    %v245 = vmax.f32 %v242, 1e-24
    %v246 = vmax.f32 %v244, 1e-24
    %v247 = vrsqrt.pop %v245
    %v248 = vrsqrt.pop %v246
    %v249 = vmul.f32 %v247, 5.656854
    %v250 = vmul.f32 %v248, 5.656854
    %v251 = vmul.f32 %v233, %v249
    %v252 = vmul.f32 %v236, %v250
    %253 = vst [vmem:[#allocation8] sm:$0xff] %v251
    %254 = vst [vmem:[#allocation8 + $0x8] sm:$0xff] %v252
    // Predicated region
    $region30: #{tpu_custom_call.1} parent=1 // pred_check
      _
    $region31: #{tpu_custom_call.1} parent=1 // pred_check_branch
      %256 = sbr.rel (0) target = $region33
    $region32: #{tpu_custom_call.1} parent=1 // pred_region
      %s258 = ssub.s32 256, 256
      %259 = vsyncadd [#allocation4], %s258
      %s260 = sshll.u32 [#allocation8], 4
      %s261 = int_to_ptr.vmem [resolvable:$true] %s260
      %266 = dma.vmem_to_hbm [thread:$0]  %s261, 256, %s4, [#allocation4], 128, 128, 8
    $region33: #{tpu_custom_call.1} parent=1 // pred_fallthru
      _
    // Predicated region
    $region34: #{tpu_custom_call.1} parent=1 // pred_check
      _
    $region35: #{tpu_custom_call.1} parent=1 // pred_check_branch
      %268 = sbr.rel (0) target = $region37
    $region36: #{tpu_custom_call.1} parent=1 // pred_region
      %269 = dma.done [#allocation4], 256
    $region37: #{tpu_custom_call.1} parent=1 // pred_fallthru
      _
    %270 = vsyncpa [#allocation3], 1
    %271 = vsyncpa [#allocation6], 1
    %272 = vsyncpa [#allocation4], 1

</llo_original>
